<compile_context>
chip_gen: v7x
topology: tpu7x:2x2x1
jax: 0.10.0
libtpu: 0.0.40
codegen_flags: <defaults>
</compile_context>

<pallas_src>
import math
from functools import partial

import jax
import jax.numpy as jnp
from jax import lax
from jax.experimental import pallas as pl
from jax.experimental.pallas import tpu as pltpu

# ---- config (matches GPTConfig; small sequence length for the demo) ----
N_EMBD = 64
N_HEAD = 2
HEAD_DIM = N_EMBD // N_HEAD
BATCH = 2
SEQ = 8


def causal_attn_kernel(x_ref, wqkv_ref, bqkv_ref, wprojh_ref, bproj_ref, o_ref,
                       *, batch, seq, n_head, head_dim):
    B, T, nh, hd = batch, seq, n_head, head_dim
    C = nh * hd
    BT = B * T

    x = x_ref[...]                                      # (B*T, C) f32

    # ---- fused QKV projection: ONE (B*T, C) @ (C, 3C) MXU matmul ----
    # bf16 operands, f32 accumulation.
    qkv = jnp.dot(x.astype(jnp.bfloat16),
                  wqkv_ref[...].astype(jnp.bfloat16),
                  preferred_element_type=jnp.float32)   # (B*T, 3C) f32
    qkv = qkv + bqkv_ref[...]                           # bias broadcast over rows

    scale = 1.0 / math.sqrt(hd)
    q = qkv[:, 0 * C:1 * C] * scale                     # fold 1/sqrt(hd) into q
    k = qkv[:, 1 * C:2 * C]
    v = qkv[:, 2 * C:3 * C]

    # ---- gather (batch, head) slabs into one leading batch axis: (B*nh, T, hd) ----
    # Static sublane/lane slices + stack along a NEW leading axis: keeps hd lanes
    # contiguous, no lane-dim concatenate and no lane-splitting reshape.
    def to_heads(t):
        return jnp.stack(
            [t[b * T:(b + 1) * T, h * hd:(h + 1) * hd]
             for b in range(B) for h in range(nh)],
            axis=0)                                     # index = b*nh + h

    qh = to_heads(q).astype(jnp.bfloat16)               # (B*nh, T, hd)
    kh = to_heads(k).astype(jnp.bfloat16)
    vh = to_heads(v).astype(jnp.bfloat16)

    # ---- all (batch, head) pairs in ONE batched dot_general; contract hd directly ----
    s = jnp.einsum("bqd,bkd->bqk", qh, kh,
                   preferred_element_type=jnp.float32)  # (B*nh, T, T) f32

    # Additive causal mask (large negative bias instead of -inf + select).
    rows = lax.broadcasted_iota(jnp.int32, (T, T), 0)
    cols = lax.broadcasted_iota(jnp.int32, (T, T), 1)
    s = s + jnp.where(rows >= cols, 0.0, -1e30)[None, :, :]

    # Softmax in f32; denominator reciprocal on the (otherwise idle) EUP.
    s = s - jnp.max(s, axis=-1, keepdims=True)
    p = jnp.exp(s)
    p = p * pl.reciprocal(jnp.sum(p, axis=-1, keepdims=True), approx=True)

    y = jnp.einsum("bqk,bkd->bqd", p.astype(jnp.bfloat16), vh,
                   preferred_element_type=jnp.float32)  # (B*nh, T, hd) f32

    # ---- output projection as a K-split over heads: out = sum_h Y_h @ Wproj_h + b ----
    # Y_h is the (B*T, hd) slab of head h; wprojh_ref[h] = w_proj[h*hd:(h+1)*hd, :].
    # This replaces the lane-dim head concatenate with MXU accumulation over the
    # contraction (K) dimension.
    acc = jnp.zeros((BT, C), jnp.float32)
    for h in range(nh):                                  # nh=2, static
        y_h = jnp.concatenate([y[b * nh + h] for b in range(B)], axis=0)  # (B*T, hd)
        acc = acc + jnp.dot(y_h.astype(jnp.bfloat16),
                            wprojh_ref[h].astype(jnp.bfloat16),
                            preferred_element_type=jnp.float32)
    o_ref[...] = (acc + bproj_ref[...]).astype(o_ref.dtype)


def causal_self_attention(x, w_qkv, b_qkv, w_proj, b_proj):
    """x: (B, T, C); w_qkv: (C, 3C); b_qkv: (1, 3C); w_proj: (C, C); b_proj: (1, C)."""
    B, T, C = x.shape
    nh = N_HEAD
    hd = C // nh

    x_flat = x.reshape(B * T, C)                 # flatten outside the kernel (free)
    w_proj_heads = w_proj.reshape(nh, hd, C)     # per-head K-blocks of the projection

    kernel = partial(causal_attn_kernel, batch=B, seq=T, n_head=nh, head_dim=hd)
    out_flat = pl.pallas_call(
        kernel,
        out_shape=jax.ShapeDtypeStruct((B * T, C), x.dtype),
        # No grid / no BlockSpecs: every operand is a single full block resident
        # in VMEM, so there is zero per-grid-step pipeline overhead.
        compiler_params=pltpu.CompilerParams(vmem_limit_bytes=32 * 1024 * 1024),
        # TODO(synk): for production T (>=1024) this full-materialization layout
        # must become flash-style KV tiling (grid over batch*head "parallel" and
        # kv-tile "arbitrary", f32 scratch accumulators), with tile sizes derived
        # per generation (64 MiB VMEM on v7x vs 128 MiB on v5e/v6e).
    )(x_flat, w_qkv, b_qkv, w_proj_heads, b_proj)
    return out_flat.reshape(B, T, C)


def reference_attention(x, w_qkv, b_qkv, w_proj, b_proj):
    """Pure-JAX (f32) reference matching the PyTorch forward."""
    B, T, C = x.shape
    qkv = jnp.einsum("btc,cd->btd", x, w_qkv) + b_qkv[0]
    q, k, v = jnp.split(qkv, 3, axis=-1)

    def to_heads(t):
        return t.reshape(B, T, N_HEAD, HEAD_DIM).transpose(0, 2, 1, 3)

    q, k, v = map(to_heads, (q, k, v))
    s = jnp.einsum("bhqd,bhkd->bhqk", q, k) / math.sqrt(HEAD_DIM)
    mask = jnp.tril(jnp.ones((T, T), bool))
    s = jnp.where(mask, s, -jnp.inf)
    p = jax.nn.softmax(s, axis=-1)
    y = jnp.einsum("bhqk,bhkd->bhqd", p, v)
    y = y.transpose(0, 2, 1, 3).reshape(B, T, C)
    return jnp.einsum("btc,cd->btd", y, w_proj) + b_proj[0]


if __name__ == "__main__":
    key = jax.random.PRNGKey(0)
    kx, k1, k2, k3, k4 = jax.random.split(key, 5)

    x = jax.random.normal(kx, (BATCH, SEQ, N_EMBD), dtype=jnp.float32)

    # Deterministic parameter init (Linear stored as [in, out]).
    w_qkv = 0.02 * jax.random.normal(k1, (N_EMBD, 3 * N_EMBD), dtype=jnp.float32)
    b_qkv = 0.01 * jax.random.normal(k2, (1, 3 * N_EMBD), dtype=jnp.float32)
    w_proj = 0.02 * jax.random.normal(k3, (N_EMBD, N_EMBD), dtype=jnp.float32)
    b_proj = 0.01 * jax.random.normal(k4, (1, N_EMBD), dtype=jnp.float32)

    out = causal_self_attention(x, w_qkv, b_qkv, w_proj, b_proj)
    out = jax.block_until_ready(out)

    ref = reference_attention(x, w_qkv, b_qkv, w_proj, b_proj)
    assert out.shape == (BATCH, SEQ, N_EMBD)
    # Tolerance accounts for bf16 MXU operands (f32 accumulation) and the
    # approximate EUP reciprocal in the softmax denominator.
    err = jnp.max(jnp.abs(out - ref))
    assert jnp.allclose(out, ref, atol=2e-2, rtol=2e-2), f"mismatch vs reference (max abs err {err})"

    print("KERNEL_OK")
</pallas_src>

<mosaic_0001>
module attributes {stable_mosaic.version = 11 : i64} {
  func.func @causal_attn_kernel(%arg0: memref<16x64xf32, #tpu.memory_space<vmem>>, %arg1: memref<64x192xf32, #tpu.memory_space<vmem>>, %arg2: memref<1x192xf32, #tpu.memory_space<vmem>>, %arg3: memref<2x32x64xf32, #tpu.memory_space<vmem>>, %arg4: memref<1x64xf32, #tpu.memory_space<vmem>>, %arg5: memref<16x64xf32, #tpu.memory_space<vmem>>) attributes {dimension_semantics = [], scalar_prefetch = 0 : i64, scratch_operands = 0 : i64, tpu.core_type = #tpu.core_type<tc>} {
    %c0 = arith.constant 0 : index
    %c0_0 = arith.constant 0 : index
    %0 = vector.load %arg0[%c0, %c0_0] : memref<16x64xf32, #tpu.memory_space<vmem>>, vector<16x64xf32>
    %1 = arith.truncf %0 : vector<16x64xf32> to vector<16x64xbf16>
    %c0_1 = arith.constant 0 : index
    %c0_2 = arith.constant 0 : index
    %2 = vector.load %arg1[%c0_1, %c0_2] : memref<64x192xf32, #tpu.memory_space<vmem>>, vector<64x192xf32>
    %3 = arith.truncf %2 : vector<64x192xf32> to vector<64x192xbf16>
    %cst = arith.constant dense<0.000000e+00> : vector<16x192xf32>
    %4 = tpu.matmul %1, %3, %cst {dimension_numbers = #tpu.dot_dimension_numbers<[1], [0], [0], [1], [0, 0, 1, 1], [], []>} : vector<16x64xbf16>, vector<64x192xbf16>, vector<16x192xf32> -> vector<16x192xf32>
    %c0_3 = arith.constant 0 : index
    %c0_4 = arith.constant 0 : index
    %5 = vector.load %arg2[%c0_3, %c0_4] : memref<1x192xf32, #tpu.memory_space<vmem>>, vector<1x192xf32>
    %6 = vector.broadcast %5 : vector<1x192xf32> to vector<16x192xf32>
    %7 = arith.addf %4, %6 : vector<16x192xf32>
    %8 = vector.extract_strided_slice %7 {offsets = [0, 0], sizes = [16, 64], strides = [1, 1]} : vector<16x192xf32> to vector<16x64xf32>
    %cst_5 = arith.constant 0.176776692 : f32
    %9 = vector.broadcast %cst_5 : f32 to vector<16x64xf32>
    %10 = arith.mulf %8, %9 : vector<16x64xf32>
    %11 = vector.extract_strided_slice %7 {offsets = [0, 64], sizes = [16, 64], strides = [1, 1]} : vector<16x192xf32> to vector<16x64xf32>
    %12 = vector.extract_strided_slice %7 {offsets = [0, 128], sizes = [16, 64], strides = [1, 1]} : vector<16x192xf32> to vector<16x64xf32>
    %13 = vector.extract_strided_slice %10 {offsets = [0, 0], sizes = [8, 32], strides = [1, 1]} : vector<16x64xf32> to vector<8x32xf32>
    %14 = vector.extract_strided_slice %10 {offsets = [0, 32], sizes = [8, 32], strides = [1, 1]} : vector<16x64xf32> to vector<8x32xf32>
    %15 = vector.extract_strided_slice %10 {offsets = [8, 0], sizes = [8, 32], strides = [1, 1]} : vector<16x64xf32> to vector<8x32xf32>
    %16 = vector.extract_strided_slice %10 {offsets = [8, 32], sizes = [8, 32], strides = [1, 1]} : vector<16x64xf32> to vector<8x32xf32>
    %17 = vector.shape_cast %13 : vector<8x32xf32> to vector<1x8x32xf32>
    %18 = vector.shape_cast %14 : vector<8x32xf32> to vector<1x8x32xf32>
    %19 = vector.shape_cast %15 : vector<8x32xf32> to vector<1x8x32xf32>
    %20 = vector.shape_cast %16 : vector<8x32xf32> to vector<1x8x32xf32>
    %21 = tpu.concatenate %17, %18, %19, %20 in 0 : vector<1x8x32xf32>, vector<1x8x32xf32>, vector<1x8x32xf32>, vector<1x8x32xf32> -> vector<4x8x32xf32>
    %22 = arith.truncf %21 : vector<4x8x32xf32> to vector<4x8x32xbf16>
    %23 = vector.extract_strided_slice %11 {offsets = [0, 0], sizes = [8, 32], strides = [1, 1]} : vector<16x64xf32> to vector<8x32xf32>
    %24 = vector.extract_strided_slice %11 {offsets = [0, 32], sizes = [8, 32], strides = [1, 1]} : vector<16x64xf32> to vector<8x32xf32>
    %25 = vector.extract_strided_slice %11 {offsets = [8, 0], sizes = [8, 32], strides = [1, 1]} : vector<16x64xf32> to vector<8x32xf32>
    %26 = vector.extract_strided_slice %11 {offsets = [8, 32], sizes = [8, 32], strides = [1, 1]} : vector<16x64xf32> to vector<8x32xf32>
    %27 = vector.shape_cast %23 : vector<8x32xf32> to vector<1x8x32xf32>
    %28 = vector.shape_cast %24 : vector<8x32xf32> to vector<1x8x32xf32>
    %29 = vector.shape_cast %25 : vector<8x32xf32> to vector<1x8x32xf32>
    %30 = vector.shape_cast %26 : vector<8x32xf32> to vector<1x8x32xf32>
    %31 = tpu.concatenate %27, %28, %29, %30 in 0 : vector<1x8x32xf32>, vector<1x8x32xf32>, vector<1x8x32xf32>, vector<1x8x32xf32> -> vector<4x8x32xf32>
    %32 = arith.truncf %31 : vector<4x8x32xf32> to vector<4x8x32xbf16>
    %33 = vector.extract_strided_slice %12 {offsets = [0, 0], sizes = [8, 32], strides = [1, 1]} : vector<16x64xf32> to vector<8x32xf32>
    %34 = vector.extract_strided_slice %12 {offsets = [0, 32], sizes = [8, 32], strides = [1, 1]} : vector<16x64xf32> to vector<8x32xf32>
    %35 = vector.extract_strided_slice %12 {offsets = [8, 0], sizes = [8, 32], strides = [1, 1]} : vector<16x64xf32> to vector<8x32xf32>
    %36 = vector.extract_strided_slice %12 {offsets = [8, 32], sizes = [8, 32], strides = [1, 1]} : vector<16x64xf32> to vector<8x32xf32>
    %37 = vector.shape_cast %33 : vector<8x32xf32> to vector<1x8x32xf32>
    %38 = vector.shape_cast %34 : vector<8x32xf32> to vector<1x8x32xf32>
    %39 = vector.shape_cast %35 : vector<8x32xf32> to vector<1x8x32xf32>
    %40 = vector.shape_cast %36 : vector<8x32xf32> to vector<1x8x32xf32>
    %41 = tpu.concatenate %37, %38, %39, %40 in 0 : vector<1x8x32xf32>, vector<1x8x32xf32>, vector<1x8x32xf32>, vector<1x8x32xf32> -> vector<4x8x32xf32>
    %42 = arith.truncf %41 : vector<4x8x32xf32> to vector<4x8x32xbf16>
    "tpu.trace_start"() <{level = 10 : i32, message = "bqd,bkd->bqk"}> : () -> ()
    %cst_6 = arith.constant dense<0.000000e+00> : vector<4x8x8xf32>
    %43 = tpu.matmul %22, %32, %cst_6 {dimension_numbers = #tpu.dot_dimension_numbers<[2], [2], [1], [1], [0, 0, 0, 1, 1, 1], [0], [0]>} : vector<4x8x32xbf16>, vector<4x8x32xbf16>, vector<4x8x8xf32> -> vector<4x8x8xf32>
    "tpu.trace_stop"() : () -> ()
    %44 = tpu.iota {dimensions = array<i32: 0>} : vector<8x8xi32>
    %45 = tpu.iota {dimensions = array<i32: 1>} : vector<8x8xi32>
    %46 = arith.cmpi sge, %44, %45 : vector<8x8xi32>
    %cst_7 = arith.constant 0.000000e+00 : f32
    %cst_8 = arith.constant -1.000000e+30 : f32
    %47 = vector.broadcast %cst_7 : f32 to vector<8x8xf32>
    %48 = vector.broadcast %cst_8 : f32 to vector<8x8xf32>
    %49 = arith.select %46, %47, %48 : vector<8x8xi1>, vector<8x8xf32>
    %50 = vector.shape_cast %49 : vector<8x8xf32> to vector<1x8x8xf32>
    %51 = vector.broadcast %50 : vector<1x8x8xf32> to vector<4x8x8xf32>
    %52 = arith.addf %43, %51 : vector<4x8x8xf32>
    %cst_9 = arith.constant dense<0xFF800000> : vector<4x8xf32>
    %53 = vector.multi_reduction <maximumf>, %52, %cst_9 [2] : vector<4x8x8xf32> to vector<4x8xf32>
    %54 = vector.shape_cast %53 : vector<4x8xf32> to vector<4x8x1xf32>
    %55 = vector.broadcast %54 : vector<4x8x1xf32> to vector<4x8x8xf32>
    %56 = arith.subf %52, %55 : vector<4x8x8xf32>
    %57 = math.exp %56 : vector<4x8x8xf32>
    %cst_10 = arith.constant dense<0.000000e+00> : vector<4x8xf32>
    %58 = vector.multi_reduction <add>, %57, %cst_10 [2] : vector<4x8x8xf32> to vector<4x8xf32>
    %59 = vector.shape_cast %58 : vector<4x8xf32> to vector<4x8x1xf32>
    %60 = tpu.reciprocal %59 {approx = true} : vector<4x8x1xf32> -> vector<4x8x1xf32>
    %61 = vector.broadcast %60 : vector<4x8x1xf32> to vector<4x8x8xf32>
    %62 = arith.mulf %57, %61 : vector<4x8x8xf32>
    %63 = arith.truncf %62 : vector<4x8x8xf32> to vector<4x8x8xbf16>
    "tpu.trace_start"() <{level = 10 : i32, message = "bqk,bkd->bqd"}> : () -> ()
    %cst_11 = arith.constant dense<0.000000e+00> : vector<4x8x32xf32>
    %64 = tpu.matmul %63, %42, %cst_11 {dimension_numbers = #tpu.dot_dimension_numbers<[2], [1], [1], [2], [0, 0, 0, 1, 1, 2], [0], [0]>} : vector<4x8x8xbf16>, vector<4x8x32xbf16>, vector<4x8x32xf32> -> vector<4x8x32xf32>
    %cst_12 = arith.constant 0.000000e+00 : f32
    "tpu.trace_stop"() : () -> ()
    %65 = vector.broadcast %cst_12 : f32 to vector<16x64xf32>
    %66 = vector.extract_strided_slice %64 {offsets = [0, 0, 0], sizes = [1, 8, 32], strides = [1, 1, 1]} : vector<4x8x32xf32> to vector<1x8x32xf32>
    %67 = vector.shape_cast %66 : vector<1x8x32xf32> to vector<8x32xf32>
    %68 = vector.extract_strided_slice %64 {offsets = [2, 0, 0], sizes = [1, 8, 32], strides = [1, 1, 1]} : vector<4x8x32xf32> to vector<1x8x32xf32>
    %69 = vector.shape_cast %68 : vector<1x8x32xf32> to vector<8x32xf32>
    %70 = tpu.concatenate %67, %69 in 0 : vector<8x32xf32>, vector<8x32xf32> -> vector<16x32xf32>
    %71 = arith.truncf %70 : vector<16x32xf32> to vector<16x32xbf16>
    %c0_13 = arith.constant 0 : index
    %c0_14 = arith.constant 0 : index
    %c0_15 = arith.constant 0 : index
    %72 = vector.load %arg3[%c0_13, %c0_14, %c0_15] : memref<2x32x64xf32, #tpu.memory_space<vmem>>, vector<1x32x64xf32>
    %73 = vector.shape_cast %72 : vector<1x32x64xf32> to vector<32x64xf32>
    %74 = arith.truncf %73 : vector<32x64xf32> to vector<32x64xbf16>
    %cst_16 = arith.constant dense<0.000000e+00> : vector<16x64xf32>
    %75 = tpu.matmul %71, %74, %cst_16 {dimension_numbers = #tpu.dot_dimension_numbers<[1], [0], [0], [1], [0, 0, 1, 1], [], []>} : vector<16x32xbf16>, vector<32x64xbf16>, vector<16x64xf32> -> vector<16x64xf32>
    %76 = arith.addf %65, %75 : vector<16x64xf32>
    %77 = vector.extract_strided_slice %64 {offsets = [1, 0, 0], sizes = [1, 8, 32], strides = [1, 1, 1]} : vector<4x8x32xf32> to vector<1x8x32xf32>
    %78 = vector.shape_cast %77 : vector<1x8x32xf32> to vector<8x32xf32>
    %79 = vector.extract_strided_slice %64 {offsets = [3, 0, 0], sizes = [1, 8, 32], strides = [1, 1, 1]} : vector<4x8x32xf32> to vector<1x8x32xf32>
    %80 = vector.shape_cast %79 : vector<1x8x32xf32> to vector<8x32xf32>
    %81 = tpu.concatenate %78, %80 in 0 : vector<8x32xf32>, vector<8x32xf32> -> vector<16x32xf32>
    %82 = arith.truncf %81 : vector<16x32xf32> to vector<16x32xbf16>
    %c1 = arith.constant 1 : index
    %c0_17 = arith.constant 0 : index
    %c0_18 = arith.constant 0 : index
    %83 = vector.load %arg3[%c1, %c0_17, %c0_18] : memref<2x32x64xf32, #tpu.memory_space<vmem>>, vector<1x32x64xf32>
    %84 = vector.shape_cast %83 : vector<1x32x64xf32> to vector<32x64xf32>
    %85 = arith.truncf %84 : vector<32x64xf32> to vector<32x64xbf16>
    %cst_19 = arith.constant dense<0.000000e+00> : vector<16x64xf32>
    %86 = tpu.matmul %82, %85, %cst_19 {dimension_numbers = #tpu.dot_dimension_numbers<[1], [0], [0], [1], [0, 0, 1, 1], [], []>} : vector<16x32xbf16>, vector<32x64xbf16>, vector<16x64xf32> -> vector<16x64xf32>
    %87 = arith.addf %76, %86 : vector<16x64xf32>
    %c0_20 = arith.constant 0 : index
    %c0_21 = arith.constant 0 : index
    %88 = vector.load %arg4[%c0_20, %c0_21] : memref<1x64xf32, #tpu.memory_space<vmem>>, vector<1x64xf32>
    %89 = vector.broadcast %88 : vector<1x64xf32> to vector<16x64xf32>
    %90 = arith.addf %87, %89 : vector<16x64xf32>
    %c0_22 = arith.constant 0 : index
    %c0_23 = arith.constant 0 : index
    %91 = vector.load %arg5[%c0_22, %c0_23] : memref<16x64xf32, #tpu.memory_space<vmem>>, vector<16x64xf32>
    tpu.vector_store %arg5[%c0_22, %c0_23], %90 {strides = array<i32>} : memref<16x64xf32, #tpu.memory_space<vmem>>, vector<16x64xf32>,
    return
  }
}

</mosaic_0001>

<llo_original>
// kernel: tpu_custom_call.1
$region0: #{tpu_custom_call.1}
  #allocation0 [shape = 'u32[]', space=smem, size = 0x4, offset = 0x4, fixed_abs, tag = 'smem constant byte address 0x4 - core index']
  #allocation1 [shape = 'u32[144,128]{1,0:T(1,128)}', space=vmem, size = 0x12000, scoped, tag = 'internal scratch']
  %s0 = inlined_call_operand.hbm [shape: f32[16,64], index: 0, kind: input, shape index: {}]
  %s1 = inlined_call_operand.hbm [shape: f32[64,192], index: 1, kind: input, shape index: {}]
  %s2 = inlined_call_operand.vmem [shape: f32[1,192], index: 2, kind: input, shape index: {}]
  %s3 = inlined_call_operand.hbm [shape: f32[2,32,64], index: 3, kind: input, shape index: {}]
  %s4 = inlined_call_operand.vmem [shape: f32[1,64], index: 4, kind: input, shape index: {}]
  %s5 = inlined_call_operand.hbm [shape: f32[16,64], index: 5, kind: output, shape index: {}]
  %s6 = sld [smem:[#allocation0]]
  $region42: #{tpu_custom_call.1} parent=0
    _
  %s8 = ssub.s32 1, %s6
  %s9 = scalar_select 0, %s8, %s6
  $region1: #{tpu_custom_call.1} parent=0
    #allocation2 [shape = 'u8[8192]{0}', space=vmem, size = 0x2000, scoped, tag = 'input window, operand 0, single buffered']
    #allocation3 [shape = 's32[1]{0}', space=sflag, size = 0x4, scoped, tag = 'scoped memory for tpu_custom_call.1']
    #allocation4 [shape = 's32[1]{0}', space=sflag, size = 0x4, scoped, tag = 'scoped memory for tpu_custom_call.1']
    #allocation5 [shape = 'u8[65536]{0}', space=vmem, size = 0x10000, scoped, tag = 'input window, operand 1, single buffered']
    #allocation6 [shape = 's32[1]{0}', space=sflag, size = 0x4, scoped, tag = 'scoped memory for tpu_custom_call.1']
    #allocation7 [shape = 'u8[32768]{0}', space=vmem, size = 0x8000, scoped, tag = 'input window, operand 3, single buffered']
    #allocation8 [shape = 'u8[8192]{0}', space=vmem, size = 0x2000, scoped, tag = 'output window, operand 0, single buffered']
    %10 = vsyncpa [#allocation3], 0
    %11 = vsyncpa [#allocation6], 0
    %12 = vsyncpa [#allocation4], 0
    // Predicated region
    $region2: #{tpu_custom_call.1} parent=1 // pred_check
      _
    $region3: #{tpu_custom_call.1} parent=1 // pred_check_branch
      %14 = sbr.rel (0) target = $region5
    $region4: #{tpu_custom_call.1} parent=1 // pred_region
      %s16 = ssub.s32 256, 256
      %17 = vsyncadd [#allocation3], %s16
      %s18 = sshll.u32 [#allocation2], 4
      %s19 = int_to_ptr.vmem [resolvable:$true] %s18
      %24 = dma.hbm_to_vmem [thread:$0]  %s0, 256, %s19, [#allocation3], 128, 128, 8
    $region5: #{tpu_custom_call.1} parent=1 // pred_fallthru
      _
    // Predicated region
    $region6: #{tpu_custom_call.1} parent=1 // pred_check
      _
    $region7: #{tpu_custom_call.1} parent=1 // pred_check_branch
      %26 = sbr.rel (0) target = $region9
    $region8: #{tpu_custom_call.1} parent=1 // pred_region
      %s28 = ssub.s32 2048, 2048
      %29 = vsyncadd [#allocation6], %s28
      %s30 = sshll.u32 [#allocation5], 4
      %s31 = int_to_ptr.vmem [resolvable:$true] %s30
      %36 = dma.hbm_to_vmem [thread:$0]  %s1, 2048, %s31, [#allocation6], 256, 256, 16
    $region9: #{tpu_custom_call.1} parent=1 // pred_fallthru
      _
    // Predicated region
    $region10: #{tpu_custom_call.1} parent=1 // pred_check
      _
    $region11: #{tpu_custom_call.1} parent=1 // pred_check_branch
      %38 = sbr.rel (0) target = $region13
    $region12: #{tpu_custom_call.1} parent=1 // pred_region
      _
    $region13: #{tpu_custom_call.1} parent=1 // pred_fallthru
      _
    // Predicated region
    $region14: #{tpu_custom_call.1} parent=1 // pred_check
      _
    $region15: #{tpu_custom_call.1} parent=1 // pred_check_branch
      %40 = sbr.rel (0) target = $region17
    $region16: #{tpu_custom_call.1} parent=1 // pred_region
      %s42 = ssub.s32 1024, 1024
      %43 = vsyncadd [#allocation6], %s42
      %s44 = sshll.u32 [#allocation7], 4
      %s45 = int_to_ptr.vmem [resolvable:$true] %s44
      %50 = dma.hbm_to_vmem [thread:$0]  %s3, 1024, %s45, [#allocation6], 128, 128, 8
    $region17: #{tpu_custom_call.1} parent=1 // pred_fallthru
      _
    // Predicated region
    $region18: #{tpu_custom_call.1} parent=1 // pred_check
      _
    $region19: #{tpu_custom_call.1} parent=1 // pred_check_branch
      %52 = sbr.rel (0) target = $region21
    $region20: #{tpu_custom_call.1} parent=1 // pred_region
      _
    $region21: #{tpu_custom_call.1} parent=1 // pred_fallthru
      _
    // Predicated region
    $region22: #{tpu_custom_call.1} parent=1 // pred_check
      _
    $region23: #{tpu_custom_call.1} parent=1 // pred_check_branch
      %54 = sbr.rel (0) target = $region25
    $region24: #{tpu_custom_call.1} parent=1 // pred_region
      %55 = dma.done [#allocation3], 256
    $region25: #{tpu_custom_call.1} parent=1 // pred_fallthru
      _
    // Predicated region
    $region26: #{tpu_custom_call.1} parent=1 // pred_check
      _
    $region27: #{tpu_custom_call.1} parent=1 // pred_check_branch
      %57 = sbr.rel (0) target = $region29
    $region28: #{tpu_custom_call.1} parent=1 // pred_region
      %58 = dma.done [#allocation6], 2048
    $region29: #{tpu_custom_call.1} parent=1 // pred_fallthru
      _
    // Predicated region
    $region30: #{tpu_custom_call.1} parent=1 // pred_check
      _
    $region31: #{tpu_custom_call.1} parent=1 // pred_check_branch
      %60 = sbr.rel (0) target = $region33
    $region32: #{tpu_custom_call.1} parent=1 // pred_region
      %61 = dma.done [#allocation6], 1024
    $region33: #{tpu_custom_call.1} parent=1 // pred_fallthru
      _
    %v63 = vld [vmem:[#allocation2] sm:$0xff]
    %v64 = vld [vmem:[#allocation2 + $0x8] sm:$0xff]
    %v65 = vpack.c.bf16 %v64, %v63
    %v66 = vld [vmem:[#allocation5] sm:$0xff]
    %v67 = vld [vmem:[#allocation5 + $0x8] sm:$0xff]
    %v68 = vld [vmem:[#allocation5 + $0x10] sm:$0xff]
    %v69 = vld [vmem:[#allocation5 + $0x18] sm:$0xff]
    %v70 = vld [vmem:[#allocation5 + $0x20] sm:$0xff]
    %v71 = vld [vmem:[#allocation5 + $0x28] sm:$0xff]
    %v72 = vld [vmem:[#allocation5 + $0x30] sm:$0xff]
    %v73 = vld [vmem:[#allocation5 + $0x38] sm:$0xff]
    %v74 = vld [vmem:[#allocation5 + $0x40] sm:$0xff]
    %v75 = vld [vmem:[#allocation5 + $0x48] sm:$0xff]
    %v76 = vld [vmem:[#allocation5 + $0x50] sm:$0xff]
    %v77 = vld [vmem:[#allocation5 + $0x58] sm:$0xff]
    %v78 = vld [vmem:[#allocation5 + $0x60] sm:$0xff]
    %v79 = vld [vmem:[#allocation5 + $0x68] sm:$0xff]
    %v80 = vld [vmem:[#allocation5 + $0x70] sm:$0xff]
    %v81 = vld [vmem:[#allocation5 + $0x78] sm:$0xff]
    %v82 = vpack.c.bf16 %v68, %v66
    %v83 = vpack.c.bf16 %v69, %v67
    %v84 = vpack.c.bf16 %v72, %v70
    %v85 = vpack.c.bf16 %v73, %v71
    %v86 = vpack.c.bf16 %v76, %v74
    %v87 = vpack.c.bf16 %v77, %v75
    %v88 = vpack.c.bf16 %v80, %v78
    %v89 = vpack.c.bf16 %v81, %v79
    %v90 = vld [vmem:[%s2] sm:$0x3]
    %v92 = vlaneseq
    %v93 = vshrl.u32 %v92, 7
    %v94 = vsub.s32 0, %v93
    %v95 = vrot.slane %v90, %v94
    %v96 = vlaneseq
    %v97 = vshrl.u32 %v96, 7
    %v98 = vsub.s32 1, %v97
    %v99 = vrot.slane %v90, %v98
    %vm102 = vcmask 523264
    %v104 = vsel %vm102, %v65, 0
    %106 = vmatprep.subr.bf16.mxu0 %v83
    %107 = vmatpush1.bf16.msra.mxu0 %v82
    %108 = vmatprep.subr.bf16.mxu0 %v85
    %109 = vmatpush1.bf16.msra.mxu0 %v84
    %110 = vmatprep.subr.bf16.mxu0 %v87
    %111 = vmatpush1.bf16.msra.mxu0 %v86
    %112 = vmatprep.subr.bf16.mxu0 %v89
    %113 = vmatpush1.bf16.msra.mxu0 %v88
    %114 = vmatprep.subr.bf16.mxu0 0
    %115 = vmatpush1.bf16.msra.mxu0 0
    %116 = vmatprep.subr.bf16.mxu0 0
    %117 = vmatpush1.bf16.msra.mxu0 0
    %118 = vmatprep.subr.bf16.mxu0 0
    %119 = vmatpush1.bf16.msra.mxu0 0
    %120 = vmatprep.subr.bf16.mxu0 0
    %121 = vmatpush1.bf16.msra.mxu0 0
    %122 = vmatprep.subr.bf16.mxu0 0
    %123 = vmatpush1.bf16.msra.mxu0 0
    %124 = vmatprep.subr.bf16.mxu0 0
    %125 = vmatpush1.bf16.msra.mxu0 0
    %126 = vmatprep.subr.bf16.mxu0 0
    %127 = vmatpush1.bf16.msra.mxu0 0
    %128 = vmatprep.subr.bf16.mxu0 0
    %129 = vmatpush1.bf16.msra.mxu0 0
    %130 = vmatprep.subr.bf16.mxu0 0
    %131 = vmatpush1.bf16.msra.mxu0 0
    %132 = vmatprep.subr.bf16.mxu0 0
    %133 = vmatpush1.bf16.msra.mxu0 0
    %134 = vmatprep.subr.bf16.mxu0 0
    %135 = vmatpush1.bf16.msra.mxu0 0
    %136 = vmatprep.subr.bf16.mxu0 0
    %137 = vmatpush1.bf16.msra.mxu0 0
    %138 = vmatprep.mubr.bf16.mxu0 0
    %139 = vmatmul.mubr.bf16.gmra.mrb[0].mxu0 %v104
    %v140 = vpop.f32.mrb[0].mxu0
    %v141 = vadd.f32 %v95, %v140
    %v142 = vpop.f32.mrb[0].mxu0
    %v143 = vadd.f32 %v99, %v142
    %v144 = vpop.f32.mrb[0].mxu0
    %v145 = vadd.f32 %v95, %v144
    %v146 = vpop.f32.mrb[0].mxu0
    %v147 = vadd.f32 %v99, %v146
    %148 = vdwg.mxu0
    %v149 = vmul.f32 %v141, 0.17677669
    %v150 = vmul.f32 %v145, 0.17677669
    %152 = vrot.lane.b32.xlu0 %v149, 96
    %v153 = vpop.permute.xlu0 %152
    %156 = vrot.lane.b32.xlu0 %v150, 96
    %v157 = vpop.permute.xlu0 %156
    %v159 = vpack.c.bf16 %v149, %v149
    %v160 = vpack.c.bf16 %v153, %v153
    %v161 = vpack.c.bf16 %v150, %v150
    %v162 = vpack.c.bf16 %v157, %v157
    %164 = vrot.lane.b32.xlu0 %v141, 96
    %v165 = vpop.permute.xlu0 %164
    %168 = vrot.lane.b32.xlu0 %v145, 96
    %v169 = vpop.permute.xlu0 %168
    %v171 = vpack.c.bf16 %v141, %v141
    %v172 = vpack.c.bf16 %v165, %v165
    %v173 = vpack.c.bf16 %v145, %v145
    %v174 = vpack.c.bf16 %v169, %v169
    %176 = vrot.lane.b32.xlu0 %v143, 96
    %v177 = vpop.permute.xlu0 %176
    %180 = vrot.lane.b32.xlu0 %v147, 96
    %v181 = vpop.permute.xlu0 %180
    %v183 = vpack.c.bf16 %v143, %v143
    %v184 = vpack.c.bf16 %v177, %v177
    %v185 = vpack.c.bf16 %v147, %v147
    %v186 = vpack.c.bf16 %v181, %v181
    %v187 = vlaneseq
    %v188 = vshrl.u32 %v187, 7
    %v189 = vlaneseq
    %v190 = vand.u32 %v189, 127
    %vm191 = vcmp.ge.s32.totalorder %v188, %v190
    %v192 = vsel %vm191, 0.0, -1e+30
    %194 = vrot.lane.b32.xlu0 %v171, 64
    %v195 = vpop.permute.xlu0 %194
    %vm196 = vcmask 261120
    %v198 = vsel %vm196, %v159, 0
    %v201 = vsel %vm196, %v195, 0
    %203 = vmatprep.subr.bf16.mxu0 0
    %204 = vmatpush1.bf16.xpose.msra.mxu0 %v201
    %205 = vmatprep.subr.bf16.mxu0 0
    %206 = vmatpush1.bf16.xpose.msra.mxu0 0
    %207 = vmatprep.subr.bf16.mxu0 0
    %208 = vmatpush1.bf16.xpose.msra.mxu0 0
    %209 = vmatprep.subr.bf16.mxu0 0
    %210 = vmatpush1.bf16.xpose.msra.mxu0 0
    %211 = vmatprep.subr.bf16.mxu0 0
    %212 = vmatpush1.bf16.xpose.msra.mxu0 0
    %213 = vmatprep.subr.bf16.mxu0 0
    %214 = vmatpush1.bf16.xpose.msra.mxu0 0
    %215 = vmatprep.subr.bf16.mxu0 0
    %216 = vmatpush1.bf16.xpose.msra.mxu0 0
    %217 = vmatprep.subr.bf16.mxu0 0
    %218 = vmatpush1.bf16.xpose.msra.mxu0 0
    %219 = vmatprep.subr.bf16.mxu0 0
    %220 = vmatpush1.bf16.xpose.msra.mxu0 0
    %221 = vmatprep.subr.bf16.mxu0 0
    %222 = vmatpush1.bf16.xpose.msra.mxu0 0
    %223 = vmatprep.subr.bf16.mxu0 0
    %224 = vmatpush1.bf16.xpose.msra.mxu0 0
    %225 = vmatprep.subr.bf16.mxu0 0
    %226 = vmatpush1.bf16.xpose.msra.mxu0 0
    %227 = vmatprep.subr.bf16.mxu0 0
    %228 = vmatpush1.bf16.xpose.msra.mxu0 0
    %229 = vmatprep.subr.bf16.mxu0 0
    %230 = vmatpush1.bf16.xpose.msra.mxu0 0
    %231 = vmatprep.subr.bf16.mxu0 0
    %232 = vmatpush1.bf16.xpose.msra.mxu0 0
    %233 = vmatprep.subr.bf16.mxu0 0
    %234 = vmatpush1.bf16.xpose.msra.mxu0 0
    %235 = vmatprep.mubr.bf16.mxu0 0
    %236 = vmatmul.mubr.bf16.gmra.mrb[0].mxu0 %v198
    %v237 = vpop.f32.mrb[0].mxu0
    %v238 = vadd.f32 %v192, %v237
    %v239 = vpop.f32.mrb[0].mxu0
    %v240 = vpop.f32.mrb[0].mxu0
    %v241 = vpop.f32.mrb[0].mxu0
    %242 = vdwg.mxu0
    %244 = vrot.lane.b32.xlu0 %v172, 64
    %v245 = vpop.permute.xlu0 %244
    %v247 = vsel %vm196, %v160, 0
    %v250 = vsel %vm196, %v245, 0
    %252 = vmatprep.subr.bf16.mxu0 0
    %253 = vmatpush1.bf16.xpose.msra.mxu0 %v250
    %254 = vmatprep.subr.bf16.mxu0 0
    %255 = vmatpush1.bf16.xpose.msra.mxu0 0
    %256 = vmatprep.subr.bf16.mxu0 0
    %257 = vmatpush1.bf16.xpose.msra.mxu0 0
    %258 = vmatprep.subr.bf16.mxu0 0
    %259 = vmatpush1.bf16.xpose.msra.mxu0 0
    %260 = vmatprep.subr.bf16.mxu0 0
    %261 = vmatpush1.bf16.xpose.msra.mxu0 0
    %262 = vmatprep.subr.bf16.mxu0 0
    %263 = vmatpush1.bf16.xpose.msra.mxu0 0
    %264 = vmatprep.subr.bf16.mxu0 0
    %265 = vmatpush1.bf16.xpose.msra.mxu0 0
    %266 = vmatprep.subr.bf16.mxu0 0
    %267 = vmatpush1.bf16.xpose.msra.mxu0 0
    %268 = vmatprep.subr.bf16.mxu0 0
    %269 = vmatpush1.bf16.xpose.msra.mxu0 0
    %270 = vmatprep.subr.bf16.mxu0 0
    %271 = vmatpush1.bf16.xpose.msra.mxu0 0
    %272 = vmatprep.subr.bf16.mxu0 0
    %273 = vmatpush1.bf16.xpose.msra.mxu0 0
    %274 = vmatprep.subr.bf16.mxu0 0
    %275 = vmatpush1.bf16.xpose.msra.mxu0 0
    %276 = vmatprep.subr.bf16.mxu0 0
    %277 = vmatpush1.bf16.xpose.msra.mxu0 0
    %278 = vmatprep.subr.bf16.mxu0 0
    %279 = vmatpush1.bf16.xpose.msra.mxu0 0
    %280 = vmatprep.subr.bf16.mxu0 0
    %281 = vmatpush1.bf16.xpose.msra.mxu0 0
    %282 = vmatprep.subr.bf16.mxu0 0
    %283 = vmatpush1.bf16.xpose.msra.mxu0 0
    %284 = vmatprep.mubr.bf16.mxu0 0
    %285 = vmatmul.mubr.bf16.gmra.mrb[0].mxu0 %v247
    %v286 = vpop.f32.mrb[0].mxu0
    %v287 = vadd.f32 %v192, %v286
    %v288 = vpop.f32.mrb[0].mxu0
    %v289 = vpop.f32.mrb[0].mxu0
    %v290 = vpop.f32.mrb[0].mxu0
    %291 = vdwg.mxu0
    %293 = vrot.lane.b32.xlu0 %v173, 64
    %v294 = vpop.permute.xlu0 %293
    %v296 = vsel %vm196, %v161, 0
    %v299 = vsel %vm196, %v294, 0
    %301 = vmatprep.subr.bf16.mxu0 0
    %302 = vmatpush1.bf16.xpose.msra.mxu0 %v299
    %303 = vmatprep.subr.bf16.mxu0 0
    %304 = vmatpush1.bf16.xpose.msra.mxu0 0
    %305 = vmatprep.subr.bf16.mxu0 0
    %306 = vmatpush1.bf16.xpose.msra.mxu0 0
    %307 = vmatprep.subr.bf16.mxu0 0
    %308 = vmatpush1.bf16.xpose.msra.mxu0 0
    %309 = vmatprep.subr.bf16.mxu0 0
    %310 = vmatpush1.bf16.xpose.msra.mxu0 0
    %311 = vmatprep.subr.bf16.mxu0 0
    %312 = vmatpush1.bf16.xpose.msra.mxu0 0
    %313 = vmatprep.subr.bf16.mxu0 0
    %314 = vmatpush1.bf16.xpose.msra.mxu0 0
    %315 = vmatprep.subr.bf16.mxu0 0
    %316 = vmatpush1.bf16.xpose.msra.mxu0 0
    %317 = vmatprep.subr.bf16.mxu0 0
    %318 = vmatpush1.bf16.xpose.msra.mxu0 0
    %319 = vmatprep.subr.bf16.mxu0 0
    %320 = vmatpush1.bf16.xpose.msra.mxu0 0
    %321 = vmatprep.subr.bf16.mxu0 0
    %322 = vmatpush1.bf16.xpose.msra.mxu0 0
    %323 = vmatprep.subr.bf16.mxu0 0
    %324 = vmatpush1.bf16.xpose.msra.mxu0 0
    %325 = vmatprep.subr.bf16.mxu0 0
    %326 = vmatpush1.bf16.xpose.msra.mxu0 0
    %327 = vmatprep.subr.bf16.mxu0 0
    %328 = vmatpush1.bf16.xpose.msra.mxu0 0
    %329 = vmatprep.subr.bf16.mxu0 0
    %330 = vmatpush1.bf16.xpose.msra.mxu0 0
    %331 = vmatprep.subr.bf16.mxu0 0
    %332 = vmatpush1.bf16.xpose.msra.mxu0 0
    %333 = vmatprep.mubr.bf16.mxu0 0
    %334 = vmatmul.mubr.bf16.gmra.mrb[0].mxu0 %v296
    %v335 = vpop.f32.mrb[0].mxu0
    %v336 = vadd.f32 %v192, %v335
    %v337 = vpop.f32.mrb[0].mxu0
    %v338 = vpop.f32.mrb[0].mxu0
    %v339 = vpop.f32.mrb[0].mxu0
    %340 = vdwg.mxu0
    %342 = vrot.lane.b32.xlu0 %v174, 64
    %v343 = vpop.permute.xlu0 %342
    %v345 = vsel %vm196, %v162, 0
    %v348 = vsel %vm196, %v343, 0
    %350 = vmatprep.subr.bf16.mxu0 0
    %351 = vmatpush1.bf16.xpose.msra.mxu0 %v348
    %352 = vmatprep.subr.bf16.mxu0 0
    %353 = vmatpush1.bf16.xpose.msra.mxu0 0
    %354 = vmatprep.subr.bf16.mxu0 0
    %355 = vmatpush1.bf16.xpose.msra.mxu0 0
    %356 = vmatprep.subr.bf16.mxu0 0
    %357 = vmatpush1.bf16.xpose.msra.mxu0 0
    %358 = vmatprep.subr.bf16.mxu0 0
    %359 = vmatpush1.bf16.xpose.msra.mxu0 0
    %360 = vmatprep.subr.bf16.mxu0 0
    %361 = vmatpush1.bf16.xpose.msra.mxu0 0
    %362 = vmatprep.subr.bf16.mxu0 0
    %363 = vmatpush1.bf16.xpose.msra.mxu0 0
    %364 = vmatprep.subr.bf16.mxu0 0
    %365 = vmatpush1.bf16.xpose.msra.mxu0 0
    %366 = vmatprep.subr.bf16.mxu0 0
    %367 = vmatpush1.bf16.xpose.msra.mxu0 0
    %368 = vmatprep.subr.bf16.mxu0 0
    %369 = vmatpush1.bf16.xpose.msra.mxu0 0
    %370 = vmatprep.subr.bf16.mxu0 0
    %371 = vmatpush1.bf16.xpose.msra.mxu0 0
    %372 = vmatprep.subr.bf16.mxu0 0
    %373 = vmatpush1.bf16.xpose.msra.mxu0 0
    %374 = vmatprep.subr.bf16.mxu0 0
    %375 = vmatpush1.bf16.xpose.msra.mxu0 0
    %376 = vmatprep.subr.bf16.mxu0 0
    %377 = vmatpush1.bf16.xpose.msra.mxu0 0
    %378 = vmatprep.subr.bf16.mxu0 0
    %379 = vmatpush1.bf16.xpose.msra.mxu0 0
    %380 = vmatprep.subr.bf16.mxu0 0
    %381 = vmatpush1.bf16.xpose.msra.mxu0 0
    %382 = vmatprep.mubr.bf16.mxu0 0
    %383 = vmatmul.mubr.bf16.gmra.mrb[0].mxu0 %v345
    %v384 = vpop.f32.mrb[0].mxu0
    %v385 = vadd.f32 %v192, %v384
    %v386 = vpop.f32.mrb[0].mxu0
    %v387 = vpop.f32.mrb[0].mxu0
    %v388 = vpop.f32.mrb[0].mxu0
    %389 = vdwg.mxu0
    %vm390 = vcmask 64512
    %v391 = vsel %vm390, %v238, -inf
    %392 = vmax.xlane.f32.xlu0 %v391
    %v393 = vpop.xlane.xlu0 %392
    %v394 = vsel %vm390, %v287, -inf
    %395 = vmax.xlane.f32.xlu0 %v394
    %v396 = vpop.xlane.xlu0 %395
    %v397 = vsel %vm390, %v336, -inf
    %398 = vmax.xlane.f32.xlu0 %v397
    %v399 = vpop.xlane.xlu0 %398
    %v400 = vsel %vm390, %v385, -inf
    %401 = vmax.xlane.f32.xlu0 %v400
    %v402 = vpop.xlane.xlu0 %401
    %v403 = vsub.f32 %v238, %v393
    %v404 = vsub.f32 %v287, %v396
    %v405 = vsub.f32 %v336, %v399
    %v406 = vsub.f32 %v385, %v402
    %v407 = vmul.f32 %v403, 1.442695
    %v408 = vpow.pop %v407
    %v409 = vmul.f32 %v404, 1.442695
    %v410 = vpow.pop %v409
    %v411 = vmul.f32 %v405, 1.442695
    %v412 = vpow.pop %v411
    %v413 = vmul.f32 %v406, 1.442695
    %v414 = vpow.pop %v413
    %v415 = vsel %vm390, %v408, 0.0
    %416 = vadd.xlane.f32.xlu0 %v415
    %v417 = vpop.xlane.xlu0 %416
    %v418 = vsel %vm390, %v410, 0.0
    %419 = vadd.xlane.f32.xlu0 %v418
    %v420 = vpop.xlane.xlu0 %419
    %v421 = vsel %vm390, %v412, 0.0
    %422 = vadd.xlane.f32.xlu0 %v421
    %v423 = vpop.xlane.xlu0 %422
    %v424 = vsel %vm390, %v414, 0.0
    %425 = vadd.xlane.f32.xlu0 %v424
    %v426 = vpop.xlane.xlu0 %425
    %v427 = vrcp.pop %v417
    %v428 = vrcp.pop %v420
    %v429 = vrcp.pop %v423
    %v430 = vrcp.pop %v426
    %v431 = vmul.f32 %v408, %v427
    %v432 = vmul.f32 %v410, %v428
    %v433 = vmul.f32 %v412, %v429
    %v434 = vmul.f32 %v414, %v430
    %v435 = vpack.c.bf16 %v431, %v431
    %v436 = vpack.c.bf16 %v432, %v432
    %v437 = vpack.c.bf16 %v433, %v433
    %v438 = vpack.c.bf16 %v434, %v434
    %v440 = vsel %vm390, %v435, 0
    %vm442 = vcmask 1043456
    %v444 = vsel %vm442, %v183, 0
    %446 = vmatprep.subr.bf16.mxu0 0
    %447 = vmatpush1.bf16.msra.mxu0 %v444
    %448 = vmatprep.subr.bf16.mxu0 0
    %449 = vmatpush1.bf16.msra.mxu0 0
    %450 = vmatprep.subr.bf16.mxu0 0
    %451 = vmatpush1.bf16.msra.mxu0 0
    %452 = vmatprep.subr.bf16.mxu0 0
    %453 = vmatpush1.bf16.msra.mxu0 0
    %454 = vmatprep.subr.bf16.mxu0 0
    %455 = vmatpush1.bf16.msra.mxu0 0
    %456 = vmatprep.subr.bf16.mxu0 0
    %457 = vmatpush1.bf16.msra.mxu0 0
    %458 = vmatprep.subr.bf16.mxu0 0
    %459 = vmatpush1.bf16.msra.mxu0 0
    %460 = vmatprep.subr.bf16.mxu0 0
    %461 = vmatpush1.bf16.msra.mxu0 0
    %462 = vmatprep.subr.bf16.mxu0 0
    %463 = vmatpush1.bf16.msra.mxu0 0
    %464 = vmatprep.subr.bf16.mxu0 0
    %465 = vmatpush1.bf16.msra.mxu0 0
    %466 = vmatprep.subr.bf16.mxu0 0
    %467 = vmatpush1.bf16.msra.mxu0 0
    %468 = vmatprep.subr.bf16.mxu0 0
    %469 = vmatpush1.bf16.msra.mxu0 0
    %470 = vmatprep.subr.bf16.mxu0 0
    %471 = vmatpush1.bf16.msra.mxu0 0
    %472 = vmatprep.subr.bf16.mxu0 0
    %473 = vmatpush1.bf16.msra.mxu0 0
    %474 = vmatprep.subr.bf16.mxu0 0
    %475 = vmatpush1.bf16.msra.mxu0 0
    %476 = vmatprep.subr.bf16.mxu0 0
    %477 = vmatpush1.bf16.msra.mxu0 0
    %478 = vmatprep.mubr.bf16.mxu0 0
    %479 = vmatmul.mubr.bf16.gmra.mrb[0].mxu0 %v440
    %v480 = vpop.f32.mrb[0].mxu0
    %v481 = vadd.f32 0.0, %v480
    %v482 = vpop.f32.mrb[0].mxu0
    %v483 = vpop.f32.mrb[0].mxu0
    %v484 = vpop.f32.mrb[0].mxu0
    %485 = vdwg.mxu0
    %v487 = vsel %vm390, %v436, 0
    %v490 = vsel %vm442, %v184, 0
    %492 = vmatprep.subr.bf16.mxu0 0
    %493 = vmatpush1.bf16.msra.mxu0 %v490
    %494 = vmatprep.subr.bf16.mxu0 0
    %495 = vmatpush1.bf16.msra.mxu0 0
    %496 = vmatprep.subr.bf16.mxu0 0
    %497 = vmatpush1.bf16.msra.mxu0 0
    %498 = vmatprep.subr.bf16.mxu0 0
    %499 = vmatpush1.bf16.msra.mxu0 0
    %500 = vmatprep.subr.bf16.mxu0 0
    %501 = vmatpush1.bf16.msra.mxu0 0
    %502 = vmatprep.subr.bf16.mxu0 0
    %503 = vmatpush1.bf16.msra.mxu0 0
    %504 = vmatprep.subr.bf16.mxu0 0
    %505 = vmatpush1.bf16.msra.mxu0 0
    %506 = vmatprep.subr.bf16.mxu0 0
    %507 = vmatpush1.bf16.msra.mxu0 0
    %508 = vmatprep.subr.bf16.mxu0 0
    %509 = vmatpush1.bf16.msra.mxu0 0
    %510 = vmatprep.subr.bf16.mxu0 0
    %511 = vmatpush1.bf16.msra.mxu0 0
    %512 = vmatprep.subr.bf16.mxu0 0
    %513 = vmatpush1.bf16.msra.mxu0 0
    %514 = vmatprep.subr.bf16.mxu0 0
    %515 = vmatpush1.bf16.msra.mxu0 0
    %516 = vmatprep.subr.bf16.mxu0 0
    %517 = vmatpush1.bf16.msra.mxu0 0
    %518 = vmatprep.subr.bf16.mxu0 0
    %519 = vmatpush1.bf16.msra.mxu0 0
    %520 = vmatprep.subr.bf16.mxu0 0
    %521 = vmatpush1.bf16.msra.mxu0 0
    %522 = vmatprep.subr.bf16.mxu0 0
    %523 = vmatpush1.bf16.msra.mxu0 0
    %524 = vmatprep.mubr.bf16.mxu0 0
    %525 = vmatmul.mubr.bf16.gmra.mrb[0].mxu0 %v487
    %v526 = vpop.f32.mrb[0].mxu0
    %v527 = vadd.f32 0.0, %v526
    %v528 = vpop.f32.mrb[0].mxu0
    %v529 = vpop.f32.mrb[0].mxu0
    %v530 = vpop.f32.mrb[0].mxu0
    %531 = vdwg.mxu0
    %v533 = vsel %vm390, %v437, 0
    %v536 = vsel %vm442, %v185, 0
    %538 = vmatprep.subr.bf16.mxu0 0
    %539 = vmatpush1.bf16.msra.mxu0 %v536
    %540 = vmatprep.subr.bf16.mxu0 0
    %541 = vmatpush1.bf16.msra.mxu0 0
    %542 = vmatprep.subr.bf16.mxu0 0
    %543 = vmatpush1.bf16.msra.mxu0 0
    %544 = vmatprep.subr.bf16.mxu0 0
    %545 = vmatpush1.bf16.msra.mxu0 0
    %546 = vmatprep.subr.bf16.mxu0 0
    %547 = vmatpush1.bf16.msra.mxu0 0
    %548 = vmatprep.subr.bf16.mxu0 0
    %549 = vmatpush1.bf16.msra.mxu0 0
    %550 = vmatprep.subr.bf16.mxu0 0
    %551 = vmatpush1.bf16.msra.mxu0 0
    %552 = vmatprep.subr.bf16.mxu0 0
    %553 = vmatpush1.bf16.msra.mxu0 0
    %554 = vmatprep.subr.bf16.mxu0 0
    %555 = vmatpush1.bf16.msra.mxu0 0
    %556 = vmatprep.subr.bf16.mxu0 0
    %557 = vmatpush1.bf16.msra.mxu0 0
    %558 = vmatprep.subr.bf16.mxu0 0
    %559 = vmatpush1.bf16.msra.mxu0 0
    %560 = vmatprep.subr.bf16.mxu0 0
    %561 = vmatpush1.bf16.msra.mxu0 0
    %562 = vmatprep.subr.bf16.mxu0 0
    %563 = vmatpush1.bf16.msra.mxu0 0
    %564 = vmatprep.subr.bf16.mxu0 0
    %565 = vmatpush1.bf16.msra.mxu0 0
    %566 = vmatprep.subr.bf16.mxu0 0
    %567 = vmatpush1.bf16.msra.mxu0 0
    %568 = vmatprep.subr.bf16.mxu0 0
    %569 = vmatpush1.bf16.msra.mxu0 0
    %570 = vmatprep.mubr.bf16.mxu0 0
    %571 = vmatmul.mubr.bf16.gmra.mrb[0].mxu0 %v533
    %v572 = vpop.f32.mrb[0].mxu0
    %v573 = vadd.f32 0.0, %v572
    %v574 = vpop.f32.mrb[0].mxu0
    %v575 = vpop.f32.mrb[0].mxu0
    %v576 = vpop.f32.mrb[0].mxu0
    %577 = vdwg.mxu0
    %v579 = vsel %vm390, %v438, 0
    %v582 = vsel %vm442, %v186, 0
    %584 = vmatprep.subr.bf16.mxu0 0
    %585 = vmatpush1.bf16.msra.mxu0 %v582
    %586 = vmatprep.subr.bf16.mxu0 0
    %587 = vmatpush1.bf16.msra.mxu0 0
    %588 = vmatprep.subr.bf16.mxu0 0
    %589 = vmatpush1.bf16.msra.mxu0 0
    %590 = vmatprep.subr.bf16.mxu0 0
    %591 = vmatpush1.bf16.msra.mxu0 0
    %592 = vmatprep.subr.bf16.mxu0 0
    %593 = vmatpush1.bf16.msra.mxu0 0
    %594 = vmatprep.subr.bf16.mxu0 0
    %595 = vmatpush1.bf16.msra.mxu0 0
    %596 = vmatprep.subr.bf16.mxu0 0
    %597 = vmatpush1.bf16.msra.mxu0 0
    %598 = vmatprep.subr.bf16.mxu0 0
    %599 = vmatpush1.bf16.msra.mxu0 0
    %600 = vmatprep.subr.bf16.mxu0 0
    %601 = vmatpush1.bf16.msra.mxu0 0
    %602 = vmatprep.subr.bf16.mxu0 0
    %603 = vmatpush1.bf16.msra.mxu0 0
    %604 = vmatprep.subr.bf16.mxu0 0
    %605 = vmatpush1.bf16.msra.mxu0 0
    %606 = vmatprep.subr.bf16.mxu0 0
    %607 = vmatpush1.bf16.msra.mxu0 0
    %608 = vmatprep.subr.bf16.mxu0 0
    %609 = vmatpush1.bf16.msra.mxu0 0
    %610 = vmatprep.subr.bf16.mxu0 0
    %611 = vmatpush1.bf16.msra.mxu0 0
    %612 = vmatprep.subr.bf16.mxu0 0
    %613 = vmatpush1.bf16.msra.mxu0 0
    %614 = vmatprep.subr.bf16.mxu0 0
    %615 = vmatpush1.bf16.msra.mxu0 0
    %616 = vmatprep.mubr.bf16.mxu0 0
    %617 = vmatmul.mubr.bf16.gmra.mrb[0].mxu0 %v579
    %v618 = vpop.f32.mrb[0].mxu0
    %v619 = vadd.f32 0.0, %v618
    %v620 = vpop.f32.mrb[0].mxu0
    %v621 = vpop.f32.mrb[0].mxu0
    %v622 = vpop.f32.mrb[0].mxu0
    %623 = vdwg.mxu0
    %v624 = vpack.c.bf16 %v573, %v481
    %v625 = vld [vmem:[#allocation7] sm:$0xff]
    %v626 = vld [vmem:[#allocation7 + $0x8] sm:$0xff]
    %v627 = vld [vmem:[#allocation7 + $0x10] sm:$0xff]
    %v628 = vld [vmem:[#allocation7 + $0x18] sm:$0xff]
    %v629 = vpack.c.bf16 %v626, %v625
    %v630 = vpack.c.bf16 %v628, %v627
    %v631 = vpack.c.bf16 %v619, %v527
    %s632 = scalar_lea.vmem [#allocation7], 32
    %v633 = vld [vmem:[%s632] sm:$0xff]
    %v634 = vld [vmem:[%s632 + $0x8] sm:$0xff]
    %v635 = vld [vmem:[%s632 + $0x10] sm:$0xff]
    %v636 = vld [vmem:[%s632 + $0x18] sm:$0xff]
    %v637 = vpack.c.bf16 %v634, %v633
    %v638 = vpack.c.bf16 %v636, %v635
    %v640 = vsel %vm196, %v631, 0
    %642 = vmatprep.subr.bf16.mxu0 0
    %643 = vmatpush1.bf16.msra.mxu0 %v637
    %644 = vmatprep.subr.bf16.mxu0 0
    %645 = vmatpush1.bf16.msra.mxu0 %v638
    %646 = vmatprep.subr.bf16.mxu0 0
    %647 = vmatpush1.bf16.msra.mxu0 0
    %648 = vmatprep.subr.bf16.mxu0 0
    %649 = vmatpush1.bf16.msra.mxu0 0
    %650 = vmatprep.subr.bf16.mxu0 0
    %651 = vmatpush1.bf16.msra.mxu0 0
    %652 = vmatprep.subr.bf16.mxu0 0
    %653 = vmatpush1.bf16.msra.mxu0 0
    %654 = vmatprep.subr.bf16.mxu0 0
    %655 = vmatpush1.bf16.msra.mxu0 0
    %656 = vmatprep.subr.bf16.mxu0 0
    %657 = vmatpush1.bf16.msra.mxu0 0
    %658 = vmatprep.subr.bf16.mxu0 0
    %659 = vmatpush1.bf16.msra.mxu0 0
    %660 = vmatprep.subr.bf16.mxu0 0
    %661 = vmatpush1.bf16.msra.mxu0 0
    %662 = vmatprep.subr.bf16.mxu0 0
    %663 = vmatpush1.bf16.msra.mxu0 0
    %664 = vmatprep.subr.bf16.mxu0 0
    %665 = vmatpush1.bf16.msra.mxu0 0
    %666 = vmatprep.subr.bf16.mxu0 0
    %667 = vmatpush1.bf16.msra.mxu0 0
    %668 = vmatprep.subr.bf16.mxu0 0
    %669 = vmatpush1.bf16.msra.mxu0 0
    %670 = vmatprep.subr.bf16.mxu0 0
    %671 = vmatpush1.bf16.msra.mxu0 0
    %672 = vmatprep.subr.bf16.mxu0 0
    %673 = vmatpush1.bf16.msra.mxu0 0
    %674 = vmatprep.mubr.bf16.mxu0 0
    %675 = vmatmul.mubr.bf16.gmra.mrb[0].mxu0 %v640
    %v676 = vpop.f32.mrb[0].mxu0
    %v677 = vadd.f32 0.0, %v676
    %v678 = vpop.f32.mrb[0].mxu0
    %v679 = vpop.f32.mrb[0].mxu0
    %v680 = vadd.f32 0.0, %v679
    %v681 = vpop.f32.mrb[0].mxu0
    %682 = vdwg.mxu0
    %v684 = vsel %vm196, %v624, 0
    %686 = vmatprep.subr.bf16.mxu0 0
    %687 = vmatpush1.bf16.msra.mxu0 %v629
    %688 = vmatprep.subr.bf16.mxu0 0
    %689 = vmatpush1.bf16.msra.mxu0 %v630
    %690 = vmatprep.subr.bf16.mxu0 0
    %691 = vmatpush1.bf16.msra.mxu0 0
    %692 = vmatprep.subr.bf16.mxu0 0
    %693 = vmatpush1.bf16.msra.mxu0 0
    %694 = vmatprep.subr.bf16.mxu0 0
    %695 = vmatpush1.bf16.msra.mxu0 0
    %696 = vmatprep.subr.bf16.mxu0 0
    %697 = vmatpush1.bf16.msra.mxu0 0
    %698 = vmatprep.subr.bf16.mxu0 0
    %699 = vmatpush1.bf16.msra.mxu0 0
    %700 = vmatprep.subr.bf16.mxu0 0
    %701 = vmatpush1.bf16.msra.mxu0 0
    %702 = vmatprep.subr.bf16.mxu0 0
    %703 = vmatpush1.bf16.msra.mxu0 0
    %704 = vmatprep.subr.bf16.mxu0 0
    %705 = vmatpush1.bf16.msra.mxu0 0
    %706 = vmatprep.subr.bf16.mxu0 0
    %707 = vmatpush1.bf16.msra.mxu0 0
    %708 = vmatprep.subr.bf16.mxu0 0
    %709 = vmatpush1.bf16.msra.mxu0 0
    %710 = vmatprep.subr.bf16.mxu0 0
    %711 = vmatpush1.bf16.msra.mxu0 0
    %712 = vmatprep.subr.bf16.mxu0 0
    %713 = vmatpush1.bf16.msra.mxu0 0
    %714 = vmatprep.subr.bf16.mxu0 0
    %715 = vmatpush1.bf16.msra.mxu0 0
    %716 = vmatprep.subr.bf16.mxu0 0
    %717 = vmatpush1.bf16.msra.mxu0 0
    %718 = vmatprep.mubr.bf16.mxu0 0
    %719 = vmatmul.mubr.bf16.gmra.mrb[0].mxu0 %v684
    %v720 = vpop.f32.mrb[0].mxu0
    %v721 = vadd.f32 %v677, %v720
    %v722 = vpop.f32.mrb[0].mxu0
    %v723 = vpop.f32.mrb[0].mxu0
    %v724 = vadd.f32 %v680, %v723
    %v725 = vpop.f32.mrb[0].mxu0
    %726 = vdwg.mxu0
    %v727 = vld [vmem:[%s4] sm:$0x1]
    %v729 = vlaneseq
    %v730 = vshrl.u32 %v729, 7
    %v731 = vsub.s32 0, %v730
    %v732 = vrot.slane %v727, %v731
    %v734 = vadd.f32 %v721, %v732
    %v735 = vadd.f32 %v724, %v732
    %736 = vst.msk [vmem:[#allocation8] sm:$0xff] %vm102, %v734
    %737 = vst.msk [vmem:[#allocation8 + $0x8] sm:$0xff] %vm102, %v735
    // Predicated region
    $region34: #{tpu_custom_call.1} parent=1 // pred_check
      _
    $region35: #{tpu_custom_call.1} parent=1 // pred_check_branch
      %739 = sbr.rel (0) target = $region37
    $region36: #{tpu_custom_call.1} parent=1 // pred_region
      %s741 = ssub.s32 256, 256
      %742 = vsyncadd [#allocation4], %s741
      %s743 = sshll.u32 [#allocation8], 4
      %s744 = int_to_ptr.vmem [resolvable:$true] %s743
      %749 = dma.vmem_to_hbm [thread:$0]  %s744, 256, %s5, [#allocation4], 128, 128, 8
    $region37: #{tpu_custom_call.1} parent=1 // pred_fallthru
      _
    // Predicated region
    $region38: #{tpu_custom_call.1} parent=1 // pred_check
      _
    $region39: #{tpu_custom_call.1} parent=1 // pred_check_branch
      %751 = sbr.rel (0) target = $region41
    $region40: #{tpu_custom_call.1} parent=1 // pred_region
      %752 = dma.done [#allocation4], 256
    $region41: #{tpu_custom_call.1} parent=1 // pred_fallthru
      _
    %753 = vsyncpa [#allocation3], 1
    %754 = vsyncpa [#allocation6], 1
    %755 = vsyncpa [#allocation4], 1

</llo_original>
